<compile_context>
chip_gen: v6e
topology: v6e:2x2x1
jax: 0.10.0
libtpu: 0.0.40
codegen_flags: <defaults>
</compile_context>

<pallas_src>
import functools

import jax
import jax.numpy as jnp
from jax.experimental import pallas as pl
from jax.experimental.pallas import tpu as pltpu


def _round_up(x, m):
    return ((x + m - 1) // m) * m


def _splade_kernel(x_ref, mask_ref, sat_ref, sent_ref, *, seq_len, ts, mask_rows):
    # x_ref:    (1, ts, tv)  token-embedding tile
    # mask_ref: (1, ts, 1)   attention mask (S on sublanes -> free lane broadcast)
    # sat_ref:  (1, ts, tv)  saturated-token-embedding output tile
    # sent_ref: (1, 1, tv)   resident running-max accumulator over the S grid axis
    s = pl.program_id(2)

    x = x_ref[0]          # (ts, tv), native input dtype
    m = mask_ref[0]       # (ts, 1)
    sat = jnp.log1p(jnp.maximum(x, 0)) * m

    if mask_rows:
        # Last S tile may run past the true sequence length; zero those rows so
        # the running max ignores them (sat >= 0, so 0 is a safe identity).
        rows = jax.lax.broadcasted_iota(jnp.int32, sat.shape, 0)
        sat = jnp.where(rows < (seq_len - s * ts), sat, 0)

    sat_out = sat.astype(sat_ref.dtype)
    sat_ref[0] = sat_out
    # Max of the rounded sat -> bit-consistent with the stored token embeddings.
    tile_max = jnp.max(sat_out, axis=0, keepdims=True).astype(sent_ref.dtype)

    @pl.when(s == 0)
    def _():
        sent_ref[0] = tile_max

    @pl.when(s > 0)
    def _():
        sent_ref[0] = jnp.maximum(sent_ref[0], tile_max)


def splade_pooler(token_embeddings, attention_mask, *, tv=None, ts_cap=512,
                  target_slab_bytes=1 << 20):
    """token_embeddings: [B, S, V]; attention_mask: [B, S]."""
    B, S, V = token_embeddings.shape
    dtype = token_embeddings.dtype
    itemsize = jnp.dtype(dtype).itemsize

    # Physical VMEM of this part (v5e/v6e: 128 MiB; v7x: 64 MiB per TC).
    try:
        vmem_cap = int(pltpu.get_tpu_info().vmem_capacity_bytes)
    except Exception:
        vmem_cap = 64 << 20  # conservative (v7x) fallback

    # Budget for live blocks + intermediates of one grid step.
    budget = min(16 << 20, vmem_cap // 4)

    # Packed-sublane granularity of the input dtype (f32->8, bf16->16, int8->32).
    gran = max(8, 32 // itemsize)

    # --- sequence (sublane) tile -------------------------------------------
    if S <= ts_cap:
        ts = S  # full extent: any S allowed
    else:
        ts = max(gran, (ts_cap // gran) * gran)

    # --- vocab (lane) tile ---------------------------------------------------
    if tv is None:
        # Aim for >= target_slab_bytes per grid step (amortize per-step
        # overhead when S is short), but keep ~7 live copies of the (ts, tv)
        # tile (2x dbuf x {x, sat} + intermediates) inside the VMEM budget.
        desired = max(1024,
                      _round_up(pl.cdiv(target_slab_bytes, max(ts * itemsize, 1)), 128))
        tv_budget = max(128, (budget // (7 * ts * itemsize) // 128) * 128)
        desired = min(desired, tv_budget)
    else:
        desired = int(tv)
    if desired >= V:
        tv = V  # full vocab: any V allowed
    else:
        tv = max(128, (desired // 128) * 128)
        if tv >= V:
            tv = V
    nv = pl.cdiv(V, tv)
    ns = pl.cdiv(S, ts)
    # Vocab axis leads (good TC load-balance even for tiny B); reduction axis last.
    grid = (nv, B, ns)

    mask3 = attention_mask.astype(dtype).reshape(B, S, 1)  # S on sublanes

    # VMEM accounting: double-buffered x/sat blocks, the lane-padded (ts,128)
    # mask block, the sublane-padded (8,tv) sent block, plus live (ts,tv)
    # intermediates -- clamped to the physical capacity minus headroom.
    block_bytes = 2 * (2 * ts * tv + ts * 128 + 8 * tv) * itemsize
    interm_bytes = 3 * ts * tv * itemsize
    vmem_limit = int(min(max(block_bytes + interm_bytes + (4 << 20), 16 << 20),
                         vmem_cap - (16 << 20)))

    cost = pl.CostEstimate(
        flops=3 * B * S * V,
        transcendentals=B * S * V,
        bytes_accessed=(2 * B * S * V + B * V + B * S) * itemsize,
    )

    kernel = functools.partial(_splade_kernel, seq_len=S, ts=ts,
                               mask_rows=(S % ts) != 0)

    sat, sent = pl.pallas_call(
        kernel,
        out_shape=(
            jax.ShapeDtypeStruct((B, S, V), dtype),
            jax.ShapeDtypeStruct((B, 1, V), dtype),
        ),
        grid_spec=pl.GridSpec(
            grid=grid,
            in_specs=[
                pl.BlockSpec((1, ts, tv), lambda j, b, s: (b, s, j)),
                pl.BlockSpec((1, ts, 1), lambda j, b, s: (b, s, 0)),
            ],
            out_specs=(
                pl.BlockSpec((1, ts, tv), lambda j, b, s: (b, s, j)),
                pl.BlockSpec((1, 1, tv), lambda j, b, s: (b, 0, j)),
            ),
        ),
        compiler_params=pltpu.CompilerParams(
            # TODO(synk): on v7x, confirm both TensorCores engage on the leading
            # vocab axis; if the profile shows one TC, switch it to
            # pltpu.CORE_PARALLEL.
            dimension_semantics=("parallel", "parallel", "arbitrary"),
            vmem_limit_bytes=vmem_limit,
        ),
        cost_estimate=cost,
    )(token_embeddings, mask3)

    return {
        "saturated_token_embeddings": sat,
        "sentence_embedding": sent.reshape(B, V),
    }


def _reference(token_embeddings, attention_mask):
    sat = jnp.log1p(jnp.maximum(token_embeddings, 0.0)) * attention_mask[..., None]
    return sat, jnp.max(sat, axis=1)


if __name__ == "__main__":
    key = jax.random.PRNGKey(0)
    k1, k2, k3 = jax.random.split(key, 3)

    # Test 1: small, nicely aligned shapes (single tile per batch).
    B, S, V = 2, 8, 256
    token_embeddings = jax.random.normal(k1, (B, S, V), dtype=jnp.float32)
    lens = jnp.array([6, 3], dtype=jnp.int32)
    attention_mask = (jnp.arange(S)[None, :] < lens[:, None]).astype(jnp.float32)

    out = splade_pooler(token_embeddings, attention_mask)
    jax.block_until_ready(out)
    sat_ref, sent_ref = _reference(token_embeddings, attention_mask)
    assert jnp.allclose(out["saturated_token_embeddings"], sat_ref, atol=1e-6)
    assert jnp.allclose(out["sentence_embedding"], sent_ref, atol=1e-6)

    # Test 2: unaligned vocab (V=300) with forced small tiles so both the
    # partial-V boundary blocks and the partial-S running-max path (row mask)
    # are exercised: tv=128 -> nv=3 (last block half OOB), ts=24 -> ns=2.
    B2, S2, V2 = 1, 32, 300
    te2 = jax.random.normal(k2, (B2, S2, V2), dtype=jnp.float32)
    lens2 = jnp.array([21], dtype=jnp.int32)
    am2 = (jnp.arange(S2)[None, :] < lens2[:, None]).astype(jnp.float32)

    out2 = splade_pooler(te2, am2, tv=128, ts_cap=24)
    jax.block_until_ready(out2)
    sat_ref2, sent_ref2 = _reference(te2, am2)
    assert jnp.allclose(out2["saturated_token_embeddings"], sat_ref2, atol=1e-6)
    assert jnp.allclose(out2["sentence_embedding"], sent_ref2, atol=1e-6)

    # Test 3: odd S and odd V with full-extent blocks (no 8/128 divisibility).
    B3, S3, V3 = 2, 13, 300
    te3 = jax.random.normal(k3, (B3, S3, V3), dtype=jnp.float32)
    lens3 = jnp.array([13, 5], dtype=jnp.int32)
    am3 = (jnp.arange(S3)[None, :] < lens3[:, None]).astype(jnp.float32)

    out3 = splade_pooler(te3, am3)
    jax.block_until_ready(out3)
    sat_ref3, sent_ref3 = _reference(te3, am3)
    assert jnp.allclose(out3["saturated_token_embeddings"], sat_ref3, atol=1e-6)
    assert jnp.allclose(out3["sentence_embedding"], sent_ref3, atol=1e-6)

    print("KERNEL_OK")
</pallas_src>

<mosaic_0001>
module attributes {stable_mosaic.version = 11 : i64} {
  func.func @_splade_kernel(%arg0: i32, %arg1: i32, %arg2: i32, %arg3: memref<1x8x256xf32, #tpu.memory_space<vmem>>, %arg4: memref<1x8x1xf32, #tpu.memory_space<vmem>>, %arg5: memref<1x8x256xf32, #tpu.memory_space<vmem>>, %arg6: memref<1x1x256xf32, #tpu.memory_space<vmem>>) attributes {dimension_semantics = [#tpu.dimension_semantics<parallel>, #tpu.dimension_semantics<parallel>, #tpu.dimension_semantics<arbitrary>], iteration_bounds = array<i64: 1, 2, 1>, scalar_prefetch = 0 : i64, scratch_operands = 0 : i64, tpu.core_type = #tpu.core_type<tc>, window_params = [{transform_indices = @transform_0, window_bounds = array<i64: 1, 8, 256>}, {transform_indices = @transform_1, window_bounds = array<i64: 1, 8, 1>}, {transform_indices = @transform_2, window_bounds = array<i64: 1, 8, 256>}, {transform_indices = @transform_3, window_bounds = array<i64: 1, 1, 256>}]} {
    %c0 = arith.constant 0 : index
    %c0_0 = arith.constant 0 : index
    %c0_1 = arith.constant 0 : index
    %0 = vector.load %arg3[%c0, %c0_0, %c0_1] : memref<1x8x256xf32, #tpu.memory_space<vmem>>, vector<1x8x256xf32>
    %1 = vector.shape_cast %0 : vector<1x8x256xf32> to vector<8x256xf32>
    %c0_2 = arith.constant 0 : index
    %c0_3 = arith.constant 0 : index
    %c0_4 = arith.constant 0 : index
    %2 = vector.load %arg4[%c0_2, %c0_3, %c0_4] : memref<1x8x1xf32, #tpu.memory_space<vmem>>, vector<1x8x1xf32>
    %3 = vector.shape_cast %2 : vector<1x8x1xf32> to vector<8x1xf32>
    %cst = arith.constant 0.000000e+00 : f32
    %4 = vector.broadcast %cst : f32 to vector<8x256xf32>
    %5 = arith.maximumf %1, %4 : vector<8x256xf32>
    %6 = math.log1p %5 : vector<8x256xf32>
    %7 = vector.broadcast %3 : vector<8x1xf32> to vector<8x256xf32>
    %8 = arith.mulf %6, %7 : vector<8x256xf32>
    %c0_5 = arith.constant 0 : index
    %c0_6 = arith.constant 0 : index
    %c0_7 = arith.constant 0 : index
    %9 = vector.load %arg5[%c0_5, %c0_6, %c0_7] : memref<1x8x256xf32, #tpu.memory_space<vmem>>, vector<1x8x256xf32>
    %10 = vector.shape_cast %9 : vector<1x8x256xf32> to vector<8x256xf32>
    %11 = vector.shape_cast %8 : vector<8x256xf32> to vector<1x8x256xf32>
    tpu.vector_store %arg5[%c0_5, %c0_6, %c0_7], %11 {strides = array<i32>} : memref<1x8x256xf32, #tpu.memory_space<vmem>>, vector<1x8x256xf32>,
    %cst_8 = arith.constant dense<0xFF800000> : vector<256xf32>
    %12 = vector.multi_reduction <maximumf>, %8, %cst_8 [0] : vector<8x256xf32> to vector<256xf32>
    %13 = vector.shape_cast %12 : vector<256xf32> to vector<1x256xf32>
    %c0_i32 = arith.constant 0 : i32
    %14 = arith.cmpi eq, %arg2, %c0_i32 : i32
    %15 = arith.extui %14 : i1 to i32
    %c0_i32_9 = arith.constant 0 : i32
    %16 = arith.cmpi ne, %15, %c0_i32_9 : i32
    scf.if %16 {
      %c0_12 = arith.constant 0 : index
      %c0_13 = arith.constant 0 : index
      %c0_14 = arith.constant 0 : index
      %20 = vector.load %arg6[%c0_12, %c0_13, %c0_14] : memref<1x1x256xf32, #tpu.memory_space<vmem>>, vector<1x1x256xf32>
      %21 = vector.shape_cast %20 : vector<1x1x256xf32> to vector<1x256xf32>
      %22 = vector.shape_cast %13 : vector<1x256xf32> to vector<1x1x256xf32>
      tpu.vector_store %arg6[%c0_12, %c0_13, %c0_14], %22 {strides = array<i32>} : memref<1x1x256xf32, #tpu.memory_space<vmem>>, vector<1x1x256xf32>,
    } else {
    }
    %c0_i32_10 = arith.constant 0 : i32
    %17 = arith.cmpi sgt, %arg2, %c0_i32_10 : i32
    %18 = arith.extui %17 : i1 to i32
    %c0_i32_11 = arith.constant 0 : i32
    %19 = arith.cmpi ne, %18, %c0_i32_11 : i32
    scf.if %19 {
      %c0_12 = arith.constant 0 : index
      %c0_13 = arith.constant 0 : index
      %c0_14 = arith.constant 0 : index
      %20 = vector.load %arg6[%c0_12, %c0_13, %c0_14] : memref<1x1x256xf32, #tpu.memory_space<vmem>>, vector<1x1x256xf32>
      %21 = vector.shape_cast %20 : vector<1x1x256xf32> to vector<1x256xf32>
      %22 = arith.maximumf %21, %13 : vector<1x256xf32>
      %c0_15 = arith.constant 0 : index
      %c0_16 = arith.constant 0 : index
      %c0_17 = arith.constant 0 : index
      %23 = vector.load %arg6[%c0_15, %c0_16, %c0_17] : memref<1x1x256xf32, #tpu.memory_space<vmem>>, vector<1x1x256xf32>
      %24 = vector.shape_cast %23 : vector<1x1x256xf32> to vector<1x256xf32>
      %25 = vector.shape_cast %22 : vector<1x256xf32> to vector<1x1x256xf32>
      tpu.vector_store %arg6[%c0_15, %c0_16, %c0_17], %25 {strides = array<i32>} : memref<1x1x256xf32, #tpu.memory_space<vmem>>, vector<1x1x256xf32>,
    } else {
    }
    return
  }
  func.func @transform_0(%arg0: i32, %arg1: i32, %arg2: i32) -> (i32, i32, i32) {
    %c0_i32 = arith.constant 0 : i32
    return %arg1, %arg2, %arg0 : i32, i32, i32
  }
  func.func @transform_1(%arg0: i32, %arg1: i32, %arg2: i32) -> (i32, i32, i32) {
    %c0_i32 = arith.constant 0 : i32
    %c0_i32_0 = arith.constant 0 : i32
    return %arg1, %arg2, %c0_i32 : i32, i32, i32
  }
  func.func @transform_2(%arg0: i32, %arg1: i32, %arg2: i32) -> (i32, i32, i32) {
    %c0_i32 = arith.constant 0 : i32
    return %arg1, %arg2, %arg0 : i32, i32, i32
  }
  func.func @transform_3(%arg0: i32, %arg1: i32, %arg2: i32) -> (i32, i32, i32) {
    %c0_i32 = arith.constant 0 : i32
    %c0_i32_0 = arith.constant 0 : i32
    return %arg1, %c0_i32, %arg0 : i32, i32, i32
  }
}

</mosaic_0001>

<llo_original>
// kernel: tpu_custom_call.1
$region0: #{tpu_custom_call.1}
  #allocation0 [shape = 'u32[]', space=smem, size = 0x4, offset = 0x4, fixed_abs, tag = 'smem constant byte address 0x4 - core index']
  #allocation1 [shape = 'u32[144,128]{1,0:T(1,128)}', space=vmem, size = 0x12000, scoped, tag = 'internal scratch']
  %s0 = inlined_call_operand.hbm [shape: f32[2,8,256], index: 0, kind: input, shape index: {}]
  %s1 = inlined_call_operand.vmem [shape: f32[2,8,1], index: 1, kind: input, shape index: {}]
  %s2 = inlined_call_operand.hbm [shape: f32[2,8,256], index: 2, kind: output, shape index: {0}]
  %s3 = inlined_call_operand.hbm [shape: f32[2,1,256], index: 3, kind: output, shape index: {1}]
  %4 = xla_tuple %s2, %s3
  %s5 = sld [smem:[#allocation0]]
  $region61: #{tpu_custom_call.1} parent=0
    _
  %s7 = ssub.s32 1, %s5
  %s8 = scalar_select 0, %s7, %s5
  $region1: #{tpu_custom_call.1} parent=0
    #allocation2 [shape = 'u8[16384]{0}', space=vmem, size = 0x4000, scoped, tag = 'input window, operand 0']
    #allocation3 [shape = 's32[2]{0}', space=sflag, size = 0x8, scoped, tag = 'scoped memory for tpu_custom_call.1']
    #allocation4 [shape = 's32[2]{0}', space=sflag, size = 0x8, scoped, tag = 'scoped memory for tpu_custom_call.1']
    #allocation5 [shape = 'u8[16384]{0}', space=vmem, size = 0x4000, scoped, tag = 'output window, operand 0']
    #allocation6 [shape = 'u8[2048]{0}', space=vmem, size = 0x800, scoped, tag = 'output window, operand 1']
    #allocation7 [shape = 's32[2]{0}', space=sflag, size = 0x8, scoped, tag = 'scoped memory for tpu_custom_call.1']
    %9 = vsyncpa [#allocation3], 0
    %s10 = scalar_lea.sflag [#allocation3], 1
    %11 = vsyncpa %s10, 0
    %12 = vsyncpa [#allocation4], 0
    %s13 = scalar_lea.sflag [#allocation4], 1
    %14 = vsyncpa %s13, 0
    %15 = vsyncpa [#allocation7], 0
    %s16 = scalar_lea.sflag [#allocation7], 1
    %17 = vsyncpa %s16, 0
    loop: start=0, step=1, limit=4
    $region2: #{tpu_custom_call.1} parent=1 // loop_pre_header
      _
    $region3: #{tpu_custom_call.1} parent=1 // loop_header
      %s19 = sphi 0, %s23
      %p20 = scmp.ge.s32.totalorder %s19, 4
      %s26 = sphi 0, %s45
      %s27 = sphi 0, %s41
      %s28 = sphi 0, %s37
      %s29 = sphi 0, %s26
      %s30 = sphi 0, %s27
      %s31 = sphi 0, %s28
      %s32 = sphi 0, %s29
      %s33 = sphi 0, %s30
      %s34 = sphi 0, %s31
      %s52 = sphi 0, %s54
      %s55 = sphi 0, %s52
      %s56 = sphi 0, %s55
      %s72 = sphi 0, %s56
      %s80 = sphi 0, %s82
      %s83 = sphi 0, %s80
      %s84 = sphi 0, %s83
      %s100 = sphi 0, %s84
      %s110 = sphi 0, %s112
      %s113 = sphi 0, %s110
      %s114 = sphi 0, %s113
      %s130 = sphi 0, %s114
      %s138 = sphi 0, %s140
      %s141 = sphi 0, %s138
      %s142 = sphi 0, %s141
      %s158 = sphi 0, %s142
    $region4: #{tpu_custom_call.1} parent=1 // loop_header_branch
      %22 = sbr.rel (%p20) target = $region8
    $region5: #{tpu_custom_call.1} parent=1 // loop_body
      %s24 = ssub.s32 %s19, 1
      %s25 = ssub.s32 %s19, 2
      %s35 = sadd.s32 1, %s28
      %p36 = scmp.ge.s32.totalorder %s35, 1
      %s37 = scalar_select %p36, 0, %s35
      %s38 = sadd.s32 1, %s27
      %s39 = scalar_select %p36, %s38, %s27
      %p40 = scmp.ge.s32.totalorder %s39, 2
      %s41 = scalar_select %p40, 0, %s39
      %s42 = sadd.s32 1, %s26
      %s43 = scalar_select %p40, %s42, %s26
      %p44 = scmp.ge.s32.totalorder %s43, 1
      %s45 = scalar_select %p44, 0, %s43
      %s46 = ssub.s32 %s27, %s41
      %s47 = ssub.s32 %s28, %s37
      %s48 = sor.u32 %s46, %s47
      %s49 = ssub.s32 %s26, %s45
      %s50 = sor.u32 %s48, %s49
      %p51 = scmp.eq.s32.totalorder %s50, 0
      %s53 = sadd.s32 %s52, 1
      %s54 = scalar_select %p51, %s52, %s53
      %p57 = pneg %p51
      %p58 = scmp.eq.s32.totalorder %s19, 1
      %p59 = por %p57, %p58
      %p60 = scmp.ne.s32.totalorder %s52, %s55
      %p61 = scmp.eq.s32.totalorder %s19, 0
      %p62 = por %p60, %p61
      %p63 = scmp.ne.s32.totalorder %s52, %s55
      %p64 = scmp.eq.s32.totalorder %s24, 1
      %p65 = por %p63, %p64
      %p66 = scmp.ne.s32.totalorder %s55, %s56
      %p67 = scmp.eq.s32.totalorder %s24, 0
      %p68 = por %p66, %p67
      %p69 = scmp.ne.s32.totalorder %s55, %s56
      %p70 = scmp.eq.s32.totalorder %s25, 1
      %p71 = por %p69, %p70
      %p73 = scmp.ne.s32.totalorder %s56, %s72
      %p74 = scmp.eq.s32.totalorder %s25, 0
      %p75 = por %p73, %p74
      %s76 = ssub.s32 %s27, %s41
      %s77 = ssub.s32 %s28, %s37
      %s78 = sor.u32 %s76, %s77
      %p79 = scmp.eq.s32.totalorder %s78, 0
      %s81 = sadd.s32 %s80, 1
      %s82 = scalar_select %p79, %s80, %s81
      %p85 = pneg %p79
      %p86 = scmp.eq.s32.totalorder %s19, 1
      %p87 = por %p85, %p86
      %p88 = scmp.ne.s32.totalorder %s80, %s83
      %p89 = scmp.eq.s32.totalorder %s19, 0
      %p90 = por %p88, %p89
      %p91 = scmp.ne.s32.totalorder %s80, %s83
      %p92 = scmp.eq.s32.totalorder %s24, 1
      %p93 = por %p91, %p92
      %p94 = scmp.ne.s32.totalorder %s83, %s84
      %p95 = scmp.eq.s32.totalorder %s24, 0
      %p96 = por %p94, %p95
      %p97 = scmp.ne.s32.totalorder %s83, %s84
      %p98 = scmp.eq.s32.totalorder %s25, 1
      %p99 = por %p97, %p98
      %p101 = scmp.ne.s32.totalorder %s84, %s100
      %p102 = scmp.eq.s32.totalorder %s25, 0
      %p103 = por %p101, %p102
      %s104 = ssub.s32 %s27, %s41
      %s105 = ssub.s32 %s28, %s37
      %s106 = sor.u32 %s104, %s105
      %s107 = ssub.s32 %s26, %s45
      %s108 = sor.u32 %s106, %s107
      %p109 = scmp.eq.s32.totalorder %s108, 0
      %s111 = sadd.s32 %s110, 1
      %s112 = scalar_select %p109, %s110, %s111
      %p115 = pneg %p109
      %p116 = scmp.eq.s32.totalorder %s19, 1
      %p117 = por %p115, %p116
      %p118 = scmp.ne.s32.totalorder %s110, %s113
      %p119 = scmp.eq.s32.totalorder %s19, 0
      %p120 = por %p118, %p119
      %p121 = scmp.ne.s32.totalorder %s110, %s113
      %p122 = scmp.eq.s32.totalorder %s24, 1
      %p123 = por %p121, %p122
      %p124 = scmp.ne.s32.totalorder %s113, %s114
      %p125 = scmp.eq.s32.totalorder %s24, 0
      %p126 = por %p124, %p125
      %p127 = scmp.ne.s32.totalorder %s113, %s114
      %p128 = scmp.eq.s32.totalorder %s25, 1
      %p129 = por %p127, %p128
      %p131 = scmp.ne.s32.totalorder %s114, %s130
      %p132 = scmp.eq.s32.totalorder %s25, 0
      %p133 = por %p131, %p132
      %s134 = ssub.s32 %s27, %s41
      %s135 = ssub.s32 %s26, %s45
      %s136 = sor.u32 %s134, %s135
      %p137 = scmp.eq.s32.totalorder %s136, 0
      %s139 = sadd.s32 %s138, 1
      %s140 = scalar_select %p137, %s138, %s139
      %p143 = pneg %p137
      %p144 = scmp.eq.s32.totalorder %s19, 1
      %p145 = por %p143, %p144
      %p146 = scmp.ne.s32.totalorder %s138, %s141
      %p147 = scmp.eq.s32.totalorder %s19, 0
      %p148 = por %p146, %p147
      %p149 = scmp.ne.s32.totalorder %s138, %s141
      %p150 = scmp.eq.s32.totalorder %s24, 1
      %p151 = por %p149, %p150
      %p152 = scmp.ne.s32.totalorder %s141, %s142
      %p153 = scmp.eq.s32.totalorder %s24, 0
      %p154 = por %p152, %p153
      %p155 = scmp.ne.s32.totalorder %s141, %s142
      %p156 = scmp.eq.s32.totalorder %s25, 1
      %p157 = por %p155, %p156
      %p159 = scmp.ne.s32.totalorder %s142, %s158
      %p160 = scmp.eq.s32.totalorder %s25, 0
      %p161 = por %p159, %p160
      %p162 = scmp.le.s32.totalorder 1, %s19
      %p163 = scmp.lt.s32.totalorder %s19, 3
      %p164 = pnand %p162, %p163
      %p165 = pneg %p164
      // Predicated region
      $region9: #{tpu_custom_call.1} parent=5 // pred_check
        _
      $region10: #{tpu_custom_call.1} parent=5 // pred_check_branch
        %167 = sbr.rel (%p164) target = $region12
      $region11: #{tpu_custom_call.1} parent=5 // pred_region
        %s168 = ssub.s32 %s19, 1
      $region12: #{tpu_custom_call.1} parent=5 // pred_fallthru
        _
      %p169 = scmp.lt.s32.totalorder %s19, 2
      // Predicated region
      $region13: #{tpu_custom_call.1} parent=5 // pred_check
        %p170 = pneg %p169
      $region14: #{tpu_custom_call.1} parent=5 // pred_check_branch
        %172 = sbr.rel (%p170) target = $region16
      $region15: #{tpu_custom_call.1} parent=5 // pred_region
        // Predicated region
        $region17: #{tpu_custom_call.1} parent=15 // pred_check
          %p173 = pneg %p62
        $region18: #{tpu_custom_call.1} parent=15 // pred_check_branch
          %175 = sbr.rel (%p173) target = $region20
        $region19: #{tpu_custom_call.1} parent=15 // pred_region
          %s176 = sand.u32 %s52, 1
          %s177 = scalar_lea.sflag [#allocation3], %s176
          %s178 = sand.u32 %s52, 1
          %s179 = smul.addr %s178, 16
          %s180 = scalar_lea.vmem [#allocation2], %s179
          %s181 = smul.u32 2, %s26
          %s183 = ssub.s32 256, 256
          %184 = vsyncadd %s177, %s183
          %s185 = smul.addr %s28, 2
          %s186 = sadd.s32 %s181, %s185
          %s187 = smul.addr %s27, 2
          %s188 = sadd.s32 %s186, %s187
          %s189 = smul.addr %s188, 128
          %s190 = scalar_lea.hbm %s0, %s189
          %s192 = sshll.u32 %s180, 4
          %s193 = int_to_ptr.vmem [resolvable:$true] %s192
          %195 = dma.hbm_to_vmem [thread:$0]  %s190, 256, %s193, %s177
        $region20: #{tpu_custom_call.1} parent=15 // pred_fallthru
          _
        // Predicated region
        $region21: #{tpu_custom_call.1} parent=15 // pred_check
          %p196 = pneg %p90
        $region22: #{tpu_custom_call.1} parent=15 // pred_check_branch
          %198 = sbr.rel (%p196) target = $region24
        $region23: #{tpu_custom_call.1} parent=15 // pred_region
          %p199 = scmp.lt.s32.totalorder %s27, 1
          %s200 = scalar_select %p199, %s27, 1
          %p201 = scmp.lt.s32.totalorder %s28, 0
          %s202 = scalar_select %p201, %s28, 0
          %s203 = sadd.s32 %s202, %s200
          %s204 = smul.addr %s203, 8
          %s205 = scalar_lea.vmem %s1, %s204
        $region24: #{tpu_custom_call.1} parent=15 // pred_fallthru
          _
      $region16: #{tpu_custom_call.1} parent=5 // pred_fallthru
        _
      %p206 = scmp.le.s32.totalorder 1, %s19
      %p207 = scmp.lt.s32.totalorder %s19, 3
      %p208 = pnand %p206, %p207
      %p209 = pneg %p208
      // Predicated region
      $region25: #{tpu_custom_call.1} parent=5 // pred_check
        _
      $region26: #{tpu_custom_call.1} parent=5 // pred_check_branch
        %211 = sbr.rel (%p208) target = $region28
      $region27: #{tpu_custom_call.1} parent=5 // pred_region
        %s212 = ssub.s32 %s19, 1
        %s213 = sand.u32 %s55, 1
        %s214 = scalar_lea.sflag [#allocation3], %s213
        %s215 = sand.u32 %s55, 1
        %s216 = smul.addr %s215, 16
        %s217 = scalar_lea.vmem [#allocation2], %s216
        // Predicated region
        $region29: #{tpu_custom_call.1} parent=27 // pred_check
          %p218 = pneg %p68
        $region30: #{tpu_custom_call.1} parent=27 // pred_check_branch
          %220 = sbr.rel (%p218) target = $region32
        $region31: #{tpu_custom_call.1} parent=27 // pred_region
          %221 = dma.done %s214, 256
        $region32: #{tpu_custom_call.1} parent=27 // pred_fallthru
          _
        %s222 = sand.u32 %s55, 1
        %s223 = scalar_lea.sflag [#allocation3], %s222
        %s224 = sand.u32 %s55, 1
        %s225 = smul.addr %s224, 16
        %s226 = scalar_lea.vmem [#allocation2], %s225
        %p227 = pneg %p68
        %p228 = pneg %p65
        %p229 = scmp.lt.s32.totalorder %s30, 1
        %s230 = scalar_select %p229, %s30, 1
        %p231 = scmp.lt.s32.totalorder %s31, 0
        %s232 = scalar_select %p231, %s31, 0
        %s233 = sadd.s32 %s232, %s230
        %s234 = smul.addr %s233, 8
        %s235 = scalar_lea.vmem %s1, %s234
        %p236 = pneg %p96
        %p237 = pneg %p93
        %p238 = pneg %p126
        %p239 = pneg %p123
        %s240 = sand.u32 %s113, 1
        %s241 = scalar_lea.sflag [#allocation4], %s240
        %s242 = sand.u32 %s113, 1
        %s243 = smul.addr %s242, 16
        %s244 = scalar_lea.vmem [#allocation5], %s243
        %p245 = pneg %p154
        %p246 = pneg %p151
        %s247 = sand.u32 %s141, 1
        %s248 = scalar_lea.sflag [#allocation7], %s247
        %s249 = sand.u32 %s141, 1
        %s250 = smul.addr %s249, 2
        %s251 = scalar_lea.vmem [#allocation6], %s250
        %s252 = smul.u32 2, %s29
        %p253 = scmp.lt.s32.totalorder %s30, 1
        %s254 = scalar_select %p253, %s30, 1
        %p255 = scmp.lt.s32.totalorder %s31, 0
        %s256 = scalar_select %p255, %s31, 0
        %s257 = sadd.s32 %s256, %s254
        %s258 = smul.addr %s257, 8
        %s259 = scalar_lea.vmem %s1, %s258
        %s260 = smul.u32 2, %s29
        %s261 = smul.u32 2, %s29
        %v262 = vld [vmem:[%s217] sm:$0xff]
        %v263 = vld [vmem:[%s217 + $0x8] sm:$0xff]
        %v264 = vld [vmem:[%s259] sm:$0xff]
        %v265 = vmax.f32 %v262, 0.0
        %v266 = vmax.f32 %v263, 0.0
        %v267 = vadd.f32 %v265, 1.0
        %v268 = vlog2.pop %v267
        %v269 = vmul.f32 %v268, 0.6931472
        %v270 = vmul.f32 -0.5, %v265
        %v271 = vadd.f32 %v270, 1.0
        %v272 = vmul.f32 %v271, %v265
        %v273 = vand.u32 2147483647, %v265
        %vm274 = vcmp.lt.f32.partialorder %v273, 0.0004427343
        %v275 = vsel %vm274, %v272, %v269
        %v276 = vadd.f32 %v266, 1.0
        %v277 = vlog2.pop %v276
        %v278 = vmul.f32 %v277, 0.6931472
        %v279 = vmul.f32 -0.5, %v266
        %v280 = vadd.f32 %v279, 1.0
        %v281 = vmul.f32 %v280, %v266
        %v282 = vand.u32 2147483647, %v266
        %vm283 = vcmp.lt.f32.partialorder %v282, 0.0004427343
        %v284 = vsel %vm283, %v281, %v278
        %286 = vset.pattern.permute.xlu0 0
        %287 = vperm.xlu0 %286, %v264
        %v288 = vpop.permute.xlu0 %287
        %v290 = vmul.f32 %v275, %v288
        %v291 = vmul.f32 %v284, %v288
        %292 = vst [vmem:[%s244] sm:$0xff] %v290
        %293 = vst [vmem:[%s244 + $0x8] sm:$0xff] %v291
        %v294 = vrot.slane %v290, 4
        %v295 = vmax.f32 %v290, %v294
        %v296 = vrot.slane %v295, 2
        %v297 = vmax.f32 %v295, %v296
        %v298 = vrot.slane %v297, 1
        %v299 = vmax.f32 %v297, %v298
        %v300 = vrot.slane %v291, 4
        %v301 = vmax.f32 %v291, %v300
        %v302 = vrot.slane %v301, 2
        %v303 = vmax.f32 %v301, %v302
        %v304 = vrot.slane %v303, 1
        %v305 = vmax.f32 %v303, %v304
        %p306 = scmp.eq.s32.totalorder %s31, 0
        // Predicated region
        $region33: #{tpu_custom_call.1} parent=27 // pred_check
          %p307 = pneg %p306
        $region34: #{tpu_custom_call.1} parent=27 // pred_check_branch
          %309 = sbr.rel (%p307) target = $region36
        $region35: #{tpu_custom_call.1} parent=27 // pred_region
          %v312 = vcombine.low %v299, %v305
          %v314 = vunpack.c.l.s4 1966171168
          %v315 = vunpack.c.0.s8 %v314
          %v316 = vlaneseq
          %v317 = vshrl.u32 %v316, 7
          %v318 = vsub.s32 %v315, %v317
          %v319 = vrot.slane %v312, %v318
          %v321 = vunpack.c.l.s4 1966171168
          %v322 = vunpack.c.0.s8 %v321
          %v323 = vlaneseq
          %v324 = vshrl.u32 %v323, 7
          %v325 = vsub.s32 %v322, %v324
          %v326 = vrot.slane %v319, %v325
          %v328 = vlaneseq
          %vm329 = vcmp.ge.s32.totalorder %v328, 0
          %vm330 = vcmp.lt.s32.totalorder %v328, 256
          %vm331 = vmand %vm329, %vm330
          %332 = vst.msk [vmem:[%s251] sm:$0x3] %vm331, %v326
        $region36: #{tpu_custom_call.1} parent=27 // pred_fallthru
          _
        %p333 = scmp.gt.s32.totalorder %s31, 0
        // Predicated region
        $region37: #{tpu_custom_call.1} parent=27 // pred_check
          %p334 = pneg %p333
        $region38: #{tpu_custom_call.1} parent=27 // pred_check_branch
          %336 = sbr.rel (%p334) target = $region40
        $region39: #{tpu_custom_call.1} parent=27 // pred_region
          %v337 = vld [vmem:[%s251] sm:$0x3]
          %v340 = vcombine.low %v299, %v305
          %v342 = vunpack.c.l.s4 1966171168
          %v343 = vunpack.c.0.s8 %v342
          %v344 = vlaneseq
          %v345 = vshrl.u32 %v344, 7
          %v346 = vsub.s32 %v343, %v345
          %v347 = vrot.slane %v340, %v346
          %v349 = vunpack.c.l.s4 1966171168
          %v350 = vunpack.c.0.s8 %v349
          %v351 = vlaneseq
          %v352 = vshrl.u32 %v351, 7
          %v353 = vsub.s32 %v350, %v352
          %v354 = vrot.slane %v347, %v353
          %v356 = vmax.f32 %v337, %v354
          %v357 = vlaneseq
          %vm358 = vcmp.ge.s32.totalorder %v357, 0
          %vm359 = vcmp.lt.s32.totalorder %v357, 256
          %vm360 = vmand %vm358, %vm359
          %361 = vst.msk [vmem:[%s251] sm:$0x3] %vm360, %v356
        $region40: #{tpu_custom_call.1} parent=27 // pred_fallthru
          _
        %s362 = sand.u32 %s113, 1
        %s363 = scalar_lea.sflag [#allocation4], %s362
        %s364 = sand.u32 %s113, 1
        %s365 = smul.addr %s364, 16
        %s366 = scalar_lea.vmem [#allocation5], %s365
        %s367 = sand.u32 %s141, 1
        %s368 = scalar_lea.sflag [#allocation7], %s367
        %s369 = sand.u32 %s141, 1
        %s370 = smul.addr %s369, 2
        %s371 = scalar_lea.vmem [#allocation6], %s370
        // Predicated region
        $region41: #{tpu_custom_call.1} parent=27 // pred_check
          %p372 = pneg %p123
        $region42: #{tpu_custom_call.1} parent=27 // pred_check_branch
          %374 = sbr.rel (%p372) target = $region44
        $region43: #{tpu_custom_call.1} parent=27 // pred_region
          %s375 = smul.u32 2, %s29
          %s377 = ssub.s32 256, 256
          %378 = vsyncadd %s363, %s377
          %s379 = smul.addr %s31, 2
          %s380 = sadd.s32 %s375, %s379
          %s381 = smul.addr %s30, 2
          %s382 = sadd.s32 %s380, %s381
          %s383 = smul.addr %s382, 128
          %s384 = scalar_lea.hbm %s2, %s383
          %s386 = sshll.u32 %s366, 4
          %s387 = int_to_ptr.vmem [resolvable:$true] %s386
          %389 = dma.vmem_to_hbm [thread:$0]  %s387, 256, %s384, %s363
        $region44: #{tpu_custom_call.1} parent=27 // pred_fallthru
          _
        // Predicated region
        $region45: #{tpu_custom_call.1} parent=27 // pred_check
          %p390 = pneg %p151
        $region46: #{tpu_custom_call.1} parent=27 // pred_check_branch
          %392 = sbr.rel (%p390) target = $region48
        $region47: #{tpu_custom_call.1} parent=27 // pred_region
          %s393 = smul.u32 2, %s29
          %s395 = ssub.s32 32, 32
          %396 = vsyncadd %s368, %s395
          %s397 = smul.addr %s30, 2
          %s398 = sadd.s32 %s393, %s397
          %s399 = smul.addr %s398, 16
          %s400 = scalar_lea.hbm %s3, %s399
          %s402 = sshll.u32 %s371, 4
          %s403 = int_to_ptr.vmem [resolvable:$true] %s402
          %405 = dma.vmem_to_hbm [thread:$0]  %s403, 32, %s400, %s368
        $region48: #{tpu_custom_call.1} parent=27 // pred_fallthru
          _
      $region28: #{tpu_custom_call.1} parent=5 // pred_fallthru
        _
      %p406 = scmp.le.s32.totalorder 2, %s19
      // Predicated region
      $region49: #{tpu_custom_call.1} parent=5 // pred_check
        %p407 = pneg %p406
      $region50: #{tpu_custom_call.1} parent=5 // pred_check_branch
        %409 = sbr.rel (%p407) target = $region52
      $region51: #{tpu_custom_call.1} parent=5 // pred_region
        %s410 = ssub.s32 %s19, 2
        // Predicated region
        $region53: #{tpu_custom_call.1} parent=51 // pred_check
          %p411 = pneg %p129
        $region54: #{tpu_custom_call.1} parent=51 // pred_check_branch
          %413 = sbr.rel (%p411) target = $region56
        $region55: #{tpu_custom_call.1} parent=51 // pred_region
          %s414 = sand.u32 %s114, 1
          %s415 = scalar_lea.sflag [#allocation4], %s414
          %s416 = sand.u32 %s114, 1
          %s417 = smul.addr %s416, 16
          %s418 = scalar_lea.vmem [#allocation5], %s417
          %419 = dma.done %s415, 256
        $region56: #{tpu_custom_call.1} parent=51 // pred_fallthru
          _
        // Predicated region
        $region57: #{tpu_custom_call.1} parent=51 // pred_check
          %p420 = pneg %p157
        $region58: #{tpu_custom_call.1} parent=51 // pred_check_branch
          %422 = sbr.rel (%p420) target = $region60
        $region59: #{tpu_custom_call.1} parent=51 // pred_region
          %s423 = sand.u32 %s142, 1
          %s424 = scalar_lea.sflag [#allocation7], %s423
          %s425 = sand.u32 %s142, 1
          %s426 = smul.addr %s425, 2
          %s427 = scalar_lea.vmem [#allocation6], %s426
          %428 = dma.done %s424, 32
        $region60: #{tpu_custom_call.1} parent=51 // pred_fallthru
          _
      $region52: #{tpu_custom_call.1} parent=5 // pred_fallthru
        _
    $region6: #{tpu_custom_call.1} parent=1 // loop_footer
      %s23 = sadd.s32 1, %s19
    $region7: #{tpu_custom_call.1} parent=1 // loop_footer_branch
      %18 = sbr.rel target = $region3
    $region8: #{tpu_custom_call.1} parent=1 // loop_exit
      _
    %429 = vsyncpa [#allocation3], 1
    %s430 = scalar_lea.sflag [#allocation3], 1
    %431 = vsyncpa %s430, 1
    %432 = vsyncpa [#allocation4], 1
    %s433 = scalar_lea.sflag [#allocation4], 1
    %434 = vsyncpa %s433, 1
    %435 = vsyncpa [#allocation7], 1
    %s436 = scalar_lea.sflag [#allocation7], 1
    %437 = vsyncpa %s436, 1

</llo_original>
